<compile_context>
chip_gen: v5e
topology: v5e:2x2
jax: 0.10.0
libtpu: 0.0.40
codegen_flags: <defaults>
</compile_context>

<pallas_src>
import jax
import jax.numpy as jnp
from jax import lax
from jax.experimental import pallas as pl
from jax.experimental.pallas import tpu as pltpu


def _bilstm_kernel(tokf_ref, tokb_ref, table_ref, whh_ref, h0c0_ref, out_ref):
    seq, twoH = out_ref.shape
    H = twoH // 2
    V2 = table_ref.shape[0]      # 2 * vocab (forward rows then backward rows)
    V = V2 // 2

    # ---- embedding gather + input projection + time reversal: ONE MXU matmul ----
    # one-hot row t lights up column tok[t] (forward half) and V + tok[seq-1-t]
    # (backward half); the table's forward/backward row blocks write disjoint gate
    # columns, so both biases are included exactly once.
    tok_f = tokf_ref[...]                                    # (seq, 1) int32
    tok_b = tokb_ref[...]                                    # (seq, 1) int32 (reversed)
    lane = lax.broadcasted_iota(jnp.int32, (seq, V2), 1)
    target = jnp.where(lane < V, tok_f, tok_b + V)
    onehot = (lane == target).astype(jnp.float32)            # (seq, 2V)
    gx = jnp.dot(onehot, table_ref[...],
                 preferred_element_type=jnp.float32)         # (seq, 8H) gate pre-acts

    # ---- fused bidirectional recurrence (both directions per iteration) ----
    whh = whh_ref[...]                                       # (2H, 8H), loaded once
    h = h0c0_ref[0:1, :]                                     # (1, 2H) = [h_f | h_b]
    c = h0c0_ref[1:2, :]                                     # (1, 2H) = [c_f | c_b]

    for t in range(seq):                                     # fully unrolled (static seq)
        gates = gx[t:t + 1, :] + jnp.dot(h, whh,
                                         preferred_element_type=jnp.float32)  # (1, 8H)
        sig = jax.nn.sigmoid(gates[:, 0:6 * H])              # contiguous slab: i, f, o
        g = jnp.tanh(gates[:, 6 * H:8 * H])                  # contiguous slab: g
        i_cat = sig[:, 0:2 * H]
        f_cat = sig[:, 2 * H:4 * H]
        o_cat = sig[:, 4 * H:6 * H]
        c = f_cat * c + i_cat * g
        h = o_cat * jnp.tanh(c)
        out_ref[t:t + 1, 0:H] = h[:, 0:H]                        # fwd output, time t
        out_ref[seq - 1 - t:seq - t, H:2 * H] = h[:, H:2 * H]    # bwd output, time seq-1-t


def _fuse_gate_cols(a_f, a_b, H):
    """Rearrange per-direction (.., 4H) gate columns (PyTorch order i,f,g,o) into the
    fused layout [i_f, i_b, f_f, f_b, o_f, o_b, g_f, g_b] of width 8H."""
    i_f, f_f, g_f, o_f = (a_f[:, 0:H], a_f[:, H:2 * H],
                          a_f[:, 2 * H:3 * H], a_f[:, 3 * H:4 * H])
    i_b, f_b, g_b, o_b = (a_b[:, 0:H], a_b[:, H:2 * H],
                          a_b[:, 2 * H:3 * H], a_b[:, 3 * H:4 * H])
    return jnp.concatenate([i_f, i_b, f_f, f_b, o_f, o_b, g_f, g_b], axis=1)


def bilstm_forward(tokens, emb, wih_f, whh_f, b_f, wih_b, whh_b, b_b, h0, c0):
    seq = tokens.shape[0]
    H = whh_f.shape[0]

    # --- weight-only preprocessing (cached / constant-folded under jit) ---
    tab_f = emb @ wih_f + b_f                       # (V, 4H) fwd gate pre-acts per token
    tab_b = emb @ wih_b + b_b                       # (V, 4H)
    z_v = jnp.zeros_like(tab_f)
    table = jnp.concatenate(
        [_fuse_gate_cols(tab_f, z_v, H),            # rows [0:V]  -> forward gate columns
         _fuse_gate_cols(z_v, tab_b, H)],           # rows [V:2V] -> backward gate columns
        axis=0)                                     # (2V, 8H)

    z_h = jnp.zeros_like(whh_f)
    whh_blk = jnp.concatenate(
        [_fuse_gate_cols(whh_f, z_h, H),            # h_f rows feed forward gate columns
         _fuse_gate_cols(z_h, whh_b, H)],           # h_b rows feed backward gate columns
        axis=0)                                     # (2H, 8H) block-diagonal

    h0c0 = jnp.stack([h0.reshape(-1), c0.reshape(-1)], axis=0)   # (2, 2H)

    tok_f = tokens.astype(jnp.int32)[:, None]       # (seq, 1)
    tok_b = tok_f[::-1]                             # (seq, 1), time-reversed

    vmem = pl.BlockSpec(memory_space=pltpu.MemorySpace.VMEM)
    out = pl.pallas_call(
        _bilstm_kernel,
        out_shape=jax.ShapeDtypeStruct((seq, 2 * H), jnp.float32),
        in_specs=[vmem, vmem, vmem, vmem, vmem],
        out_specs=vmem,
    )(tok_f, tok_b, table, whh_blk, h0c0)

    # PyTorch bidirectional, batch_first=False, batch=1: (seq, 1, 2H)
    return out[:, None, :]


def bilstm_reference(tokens, emb, wih_f, whh_f, b_f, wih_b, whh_b, b_b, h0, c0):
    """Pure-JAX reference, same math as torch.nn.LSTM (gate order i,f,g,o)."""
    H = whh_f.shape[0]
    x = emb[tokens]  # (seq, E)

    def run_dir(x_seq, wih, whh, b, h, c):
        def step(carry, xt):
            h, c = carry
            gates = xt[None, :] @ wih + h @ whh + b
            i = jax.nn.sigmoid(gates[:, 0:H])
            f = jax.nn.sigmoid(gates[:, H:2 * H])
            g = jnp.tanh(gates[:, 2 * H:3 * H])
            o = jax.nn.sigmoid(gates[:, 3 * H:4 * H])
            c_new = f * c + i * g
            h_new = o * jnp.tanh(c_new)
            return (h_new, c_new), h_new[0]
        _, hs = lax.scan(step, (h, c), x_seq)
        return hs

    out_f = run_dir(x, wih_f, whh_f, b_f, h0[0:1], c0[0:1])
    out_b = run_dir(x[::-1], wih_b, whh_b, b_b, h0[1:2], c0[1:2])[::-1]
    return jnp.concatenate([out_f, out_b], axis=-1)[:, None, :]


if __name__ == "__main__":
    # Module hyperparameters (small, consistent with the PyTorch module's forward).
    vocab_size = 50
    hidden_dim = 32      # H
    embedding_dim = 16   # E
    pad = 0
    seq_len = 8
    H, E = hidden_dim, embedding_dim

    key = jax.random.PRNGKey(0)
    keys = jax.random.split(key, 12)

    # nn.Embedding(vocab_size, embedding_dim, padding_idx=pad): N(0,1), pad row zeroed.
    emb = jax.random.normal(keys[0], (vocab_size, E), jnp.float32)
    emb = emb.at[pad].set(0.0)

    # nn.LSTM params: uniform(-1/sqrt(H), 1/sqrt(H)), pre-transposed; biases fused.
    bound = 1.0 / jnp.sqrt(jnp.float32(H))
    def u(k, shape):
        return jax.random.uniform(k, shape, jnp.float32, -bound, bound)
    wih_f = u(keys[1], (E, 4 * H))
    whh_f = u(keys[2], (H, 4 * H))
    b_f = u(keys[3], (1, 4 * H)) + u(keys[4], (1, 4 * H))   # b_ih + b_hh
    wih_b = u(keys[5], (E, 4 * H))
    whh_b = u(keys[6], (H, 4 * H))
    b_b = u(keys[7], (1, 4 * H)) + u(keys[8], (1, 4 * H))

    # init_hidden(bidirectional=True): torch.rand([2, 1, H]) -> (2, H) here (batch=1).
    h0 = jax.random.uniform(keys[9], (2, H), jnp.float32)
    c0 = jax.random.uniform(keys[10], (2, H), jnp.float32)

    # Input sentence: (seq,) int token ids.
    tokens = jax.random.randint(keys[11], (seq_len,), 0, vocab_size, jnp.int32)

    lstm_out = bilstm_forward(tokens, emb, wih_f, whh_f, b_f,
                              wih_b, whh_b, b_b, h0, c0)
    lstm_out = jax.block_until_ready(lstm_out)

    ref = bilstm_reference(tokens, emb, wih_f, whh_f, b_f,
                           wih_b, whh_b, b_b, h0, c0)
    assert lstm_out.shape == (seq_len, 1, 2 * H), lstm_out.shape
    assert jnp.allclose(lstm_out, ref, rtol=1e-5, atol=1e-5), "mismatch vs reference"

    print("KERNEL_OK")
</pallas_src>

<mosaic_0001>
module attributes {stable_mosaic.version = 11 : i64} {
  func.func @_bilstm_kernel(%arg0: memref<8x1xi32, #tpu.memory_space<vmem>>, %arg1: memref<8x1xi32, #tpu.memory_space<vmem>>, %arg2: memref<100x256xf32, #tpu.memory_space<vmem>>, %arg3: memref<64x256xf32, #tpu.memory_space<vmem>>, %arg4: memref<2x64xf32, #tpu.memory_space<vmem>>, %arg5: memref<8x64xf32, #tpu.memory_space<vmem>>) attributes {dimension_semantics = [], scalar_prefetch = 0 : i64, scratch_operands = 0 : i64, tpu.core_type = #tpu.core_type<tc>} {
    %c0 = arith.constant 0 : index
    %c0_0 = arith.constant 0 : index
    %0 = vector.load %arg0[%c0, %c0_0] : memref<8x1xi32, #tpu.memory_space<vmem>>, vector<8x1xi32>
    %c0_1 = arith.constant 0 : index
    %c0_2 = arith.constant 0 : index
    %1 = vector.load %arg1[%c0_1, %c0_2] : memref<8x1xi32, #tpu.memory_space<vmem>>, vector<8x1xi32>
    %2 = tpu.iota {dimensions = array<i32: 1>} : vector<8x100xi32>
    %c50_i32 = arith.constant 50 : i32
    %3 = vector.broadcast %c50_i32 : i32 to vector<8x100xi32>
    %4 = arith.cmpi slt, %2, %3 : vector<8x100xi32>
    %c50_i32_3 = arith.constant 50 : i32
    %5 = vector.broadcast %c50_i32_3 : i32 to vector<8x1xi32>
    %6 = arith.addi %1, %5 : vector<8x1xi32>
    %7 = vector.shape_cast %0 : vector<8x1xi32> to vector<8x1xi32>
    %8 = vector.broadcast %7 : vector<8x1xi32> to vector<8x100xi32>
    %9 = vector.shape_cast %6 : vector<8x1xi32> to vector<8x1xi32>
    %10 = vector.broadcast %9 : vector<8x1xi32> to vector<8x100xi32>
    %11 = arith.select %4, %8, %10 : vector<8x100xi1>, vector<8x100xi32>
    %12 = arith.cmpi eq, %2, %11 : vector<8x100xi32>
    %13 = arith.extui %12 : vector<8x100xi1> to vector<8x100xi32>
    %14 = arith.sitofp %13 : vector<8x100xi32> to vector<8x100xf32>
    %c0_4 = arith.constant 0 : index
    %c0_5 = arith.constant 0 : index
    %15 = vector.load %arg2[%c0_4, %c0_5] : memref<100x256xf32, #tpu.memory_space<vmem>>, vector<100x256xf32>
    %cst = arith.constant dense<0.000000e+00> : vector<8x256xf32>
    %16 = tpu.matmul %14, %15, %cst {dimension_numbers = #tpu.dot_dimension_numbers<[1], [0], [0], [1], [0, 0, 1, 1], [], []>} : vector<8x100xf32>, vector<100x256xf32>, vector<8x256xf32> -> vector<8x256xf32>
    %c0_6 = arith.constant 0 : index
    %c0_7 = arith.constant 0 : index
    %17 = vector.load %arg3[%c0_6, %c0_7] : memref<64x256xf32, #tpu.memory_space<vmem>>, vector<64x256xf32>
    %c0_8 = arith.constant 0 : index
    %c0_9 = arith.constant 0 : index
    %18 = vector.load %arg4[%c0_8, %c0_9] : memref<2x64xf32, #tpu.memory_space<vmem>>, vector<1x64xf32>
    %c1 = arith.constant 1 : index
    %c0_10 = arith.constant 0 : index
    %19 = vector.load %arg4[%c1, %c0_10] : memref<2x64xf32, #tpu.memory_space<vmem>>, vector<1x64xf32>
    %20 = vector.extract_strided_slice %16 {offsets = [0, 0], sizes = [1, 256], strides = [1, 1]} : vector<8x256xf32> to vector<1x256xf32>
    %cst_11 = arith.constant dense<0.000000e+00> : vector<1x256xf32>
    %21 = tpu.matmul %18, %17, %cst_11 {dimension_numbers = #tpu.dot_dimension_numbers<[1], [0], [0], [1], [0, 0, 1, 1], [], []>} : vector<1x64xf32>, vector<64x256xf32>, vector<1x256xf32> -> vector<1x256xf32>
    %22 = arith.addf %20, %21 : vector<1x256xf32>
    %23 = vector.extract_strided_slice %22 {offsets = [0, 0], sizes = [1, 192], strides = [1, 1]} : vector<1x256xf32> to vector<1x192xf32>
    %24 = arith.negf %23 : vector<1x192xf32>
    %25 = math.exp %24 : vector<1x192xf32>
    %cst_12 = arith.constant 1.000000e+00 : f32
    %26 = vector.broadcast %cst_12 : f32 to vector<1x192xf32>
    %27 = arith.addf %26, %25 : vector<1x192xf32>
    %28 = arith.divf %26, %27 : vector<1x192xf32>
    %29 = vector.extract_strided_slice %22 {offsets = [0, 192], sizes = [1, 64], strides = [1, 1]} : vector<1x256xf32> to vector<1x64xf32>
    %30 = math.tanh %29 : vector<1x64xf32>
    %31 = vector.extract_strided_slice %28 {offsets = [0, 0], sizes = [1, 64], strides = [1, 1]} : vector<1x192xf32> to vector<1x64xf32>
    %32 = vector.extract_strided_slice %28 {offsets = [0, 64], sizes = [1, 64], strides = [1, 1]} : vector<1x192xf32> to vector<1x64xf32>
    %33 = vector.extract_strided_slice %28 {offsets = [0, 128], sizes = [1, 64], strides = [1, 1]} : vector<1x192xf32> to vector<1x64xf32>
    %34 = arith.mulf %32, %19 : vector<1x64xf32>
    %35 = arith.mulf %31, %30 : vector<1x64xf32>
    %36 = arith.addf %34, %35 : vector<1x64xf32>
    %37 = math.tanh %36 : vector<1x64xf32>
    %38 = arith.mulf %33, %37 : vector<1x64xf32>
    %39 = vector.extract_strided_slice %38 {offsets = [0, 0], sizes = [1, 32], strides = [1, 1]} : vector<1x64xf32> to vector<1x32xf32>
    %c0_13 = arith.constant 0 : index
    %c0_14 = arith.constant 0 : index
    %40 = vector.load %arg5[%c0_13, %c0_14] : memref<8x64xf32, #tpu.memory_space<vmem>>, vector<1x32xf32>
    tpu.vector_store %arg5[%c0_13, %c0_14], %39 {strides = array<i32>} : memref<8x64xf32, #tpu.memory_space<vmem>>, vector<1x32xf32>,
    %41 = vector.extract_strided_slice %38 {offsets = [0, 32], sizes = [1, 32], strides = [1, 1]} : vector<1x64xf32> to vector<1x32xf32>
    %c7 = arith.constant 7 : index
    %c32 = arith.constant 32 : index
    %42 = vector.load %arg5[%c7, %c32] : memref<8x64xf32, #tpu.memory_space<vmem>>, vector<1x32xf32>
    tpu.vector_store %arg5[%c7, %c32], %41 {strides = array<i32>} : memref<8x64xf32, #tpu.memory_space<vmem>>, vector<1x32xf32>,
    %43 = vector.extract_strided_slice %16 {offsets = [1, 0], sizes = [1, 256], strides = [1, 1]} : vector<8x256xf32> to vector<1x256xf32>
    %cst_15 = arith.constant dense<0.000000e+00> : vector<1x256xf32>
    %44 = tpu.matmul %38, %17, %cst_15 {dimension_numbers = #tpu.dot_dimension_numbers<[1], [0], [0], [1], [0, 0, 1, 1], [], []>} : vector<1x64xf32>, vector<64x256xf32>, vector<1x256xf32> -> vector<1x256xf32>
    %45 = arith.addf %43, %44 : vector<1x256xf32>
    %46 = vector.extract_strided_slice %45 {offsets = [0, 0], sizes = [1, 192], strides = [1, 1]} : vector<1x256xf32> to vector<1x192xf32>
    %47 = arith.negf %46 : vector<1x192xf32>
    %48 = math.exp %47 : vector<1x192xf32>
    %cst_16 = arith.constant 1.000000e+00 : f32
    %49 = vector.broadcast %cst_16 : f32 to vector<1x192xf32>
    %50 = arith.addf %49, %48 : vector<1x192xf32>
    %51 = arith.divf %49, %50 : vector<1x192xf32>
    %52 = vector.extract_strided_slice %45 {offsets = [0, 192], sizes = [1, 64], strides = [1, 1]} : vector<1x256xf32> to vector<1x64xf32>
    %53 = math.tanh %52 : vector<1x64xf32>
    %54 = vector.extract_strided_slice %51 {offsets = [0, 0], sizes = [1, 64], strides = [1, 1]} : vector<1x192xf32> to vector<1x64xf32>
    %55 = vector.extract_strided_slice %51 {offsets = [0, 64], sizes = [1, 64], strides = [1, 1]} : vector<1x192xf32> to vector<1x64xf32>
    %56 = vector.extract_strided_slice %51 {offsets = [0, 128], sizes = [1, 64], strides = [1, 1]} : vector<1x192xf32> to vector<1x64xf32>
    %57 = arith.mulf %55, %36 : vector<1x64xf32>
    %58 = arith.mulf %54, %53 : vector<1x64xf32>
    %59 = arith.addf %57, %58 : vector<1x64xf32>
    %60 = math.tanh %59 : vector<1x64xf32>
    %61 = arith.mulf %56, %60 : vector<1x64xf32>
    %62 = vector.extract_strided_slice %61 {offsets = [0, 0], sizes = [1, 32], strides = [1, 1]} : vector<1x64xf32> to vector<1x32xf32>
    %c1_17 = arith.constant 1 : index
    %c0_18 = arith.constant 0 : index
    %63 = vector.load %arg5[%c1_17, %c0_18] : memref<8x64xf32, #tpu.memory_space<vmem>>, vector<1x32xf32>
    tpu.vector_store %arg5[%c1_17, %c0_18], %62 {strides = array<i32>} : memref<8x64xf32, #tpu.memory_space<vmem>>, vector<1x32xf32>,
    %64 = vector.extract_strided_slice %61 {offsets = [0, 32], sizes = [1, 32], strides = [1, 1]} : vector<1x64xf32> to vector<1x32xf32>
    %c6 = arith.constant 6 : index
    %c32_19 = arith.constant 32 : index
    %65 = vector.load %arg5[%c6, %c32_19] : memref<8x64xf32, #tpu.memory_space<vmem>>, vector<1x32xf32>
    tpu.vector_store %arg5[%c6, %c32_19], %64 {strides = array<i32>} : memref<8x64xf32, #tpu.memory_space<vmem>>, vector<1x32xf32>,
    %66 = vector.extract_strided_slice %16 {offsets = [2, 0], sizes = [1, 256], strides = [1, 1]} : vector<8x256xf32> to vector<1x256xf32>
    %cst_20 = arith.constant dense<0.000000e+00> : vector<1x256xf32>
    %67 = tpu.matmul %61, %17, %cst_20 {dimension_numbers = #tpu.dot_dimension_numbers<[1], [0], [0], [1], [0, 0, 1, 1], [], []>} : vector<1x64xf32>, vector<64x256xf32>, vector<1x256xf32> -> vector<1x256xf32>
    %68 = arith.addf %66, %67 : vector<1x256xf32>
    %69 = vector.extract_strided_slice %68 {offsets = [0, 0], sizes = [1, 192], strides = [1, 1]} : vector<1x256xf32> to vector<1x192xf32>
    %70 = arith.negf %69 : vector<1x192xf32>
    %71 = math.exp %70 : vector<1x192xf32>
    %cst_21 = arith.constant 1.000000e+00 : f32
    %72 = vector.broadcast %cst_21 : f32 to vector<1x192xf32>
    %73 = arith.addf %72, %71 : vector<1x192xf32>
    %74 = arith.divf %72, %73 : vector<1x192xf32>
    %75 = vector.extract_strided_slice %68 {offsets = [0, 192], sizes = [1, 64], strides = [1, 1]} : vector<1x256xf32> to vector<1x64xf32>
    %76 = math.tanh %75 : vector<1x64xf32>
    %77 = vector.extract_strided_slice %74 {offsets = [0, 0], sizes = [1, 64], strides = [1, 1]} : vector<1x192xf32> to vector<1x64xf32>
    %78 = vector.extract_strided_slice %74 {offsets = [0, 64], sizes = [1, 64], strides = [1, 1]} : vector<1x192xf32> to vector<1x64xf32>
    %79 = vector.extract_strided_slice %74 {offsets = [0, 128], sizes = [1, 64], strides = [1, 1]} : vector<1x192xf32> to vector<1x64xf32>
    %80 = arith.mulf %78, %59 : vector<1x64xf32>
    %81 = arith.mulf %77, %76 : vector<1x64xf32>
    %82 = arith.addf %80, %81 : vector<1x64xf32>
    %83 = math.tanh %82 : vector<1x64xf32>
    %84 = arith.mulf %79, %83 : vector<1x64xf32>
    %85 = vector.extract_strided_slice %84 {offsets = [0, 0], sizes = [1, 32], strides = [1, 1]} : vector<1x64xf32> to vector<1x32xf32>
    %c2 = arith.constant 2 : index
    %c0_22 = arith.constant 0 : index
    %86 = vector.load %arg5[%c2, %c0_22] : memref<8x64xf32, #tpu.memory_space<vmem>>, vector<1x32xf32>
    tpu.vector_store %arg5[%c2, %c0_22], %85 {strides = array<i32>} : memref<8x64xf32, #tpu.memory_space<vmem>>, vector<1x32xf32>,
    %87 = vector.extract_strided_slice %84 {offsets = [0, 32], sizes = [1, 32], strides = [1, 1]} : vector<1x64xf32> to vector<1x32xf32>
    %c5 = arith.constant 5 : index
    %c32_23 = arith.constant 32 : index
    %88 = vector.load %arg5[%c5, %c32_23] : memref<8x64xf32, #tpu.memory_space<vmem>>, vector<1x32xf32>
    tpu.vector_store %arg5[%c5, %c32_23], %87 {strides = array<i32>} : memref<8x64xf32, #tpu.memory_space<vmem>>, vector<1x32xf32>,
    %89 = vector.extract_strided_slice %16 {offsets = [3, 0], sizes = [1, 256], strides = [1, 1]} : vector<8x256xf32> to vector<1x256xf32>
    %cst_24 = arith.constant dense<0.000000e+00> : vector<1x256xf32>
    %90 = tpu.matmul %84, %17, %cst_24 {dimension_numbers = #tpu.dot_dimension_numbers<[1], [0], [0], [1], [0, 0, 1, 1], [], []>} : vector<1x64xf32>, vector<64x256xf32>, vector<1x256xf32> -> vector<1x256xf32>
    %91 = arith.addf %89, %90 : vector<1x256xf32>
    %92 = vector.extract_strided_slice %91 {offsets = [0, 0], sizes = [1, 192], strides = [1, 1]} : vector<1x256xf32> to vector<1x192xf32>
    %93 = arith.negf %92 : vector<1x192xf32>
    %94 = math.exp %93 : vector<1x192xf32>
    %cst_25 = arith.constant 1.000000e+00 : f32
    %95 = vector.broadcast %cst_25 : f32 to vector<1x192xf32>
    %96 = arith.addf %95, %94 : vector<1x192xf32>
    %97 = arith.divf %95, %96 : vector<1x192xf32>
    %98 = vector.extract_strided_slice %91 {offsets = [0, 192], sizes = [1, 64], strides = [1, 1]} : vector<1x256xf32> to vector<1x64xf32>
    %99 = math.tanh %98 : vector<1x64xf32>
    %100 = vector.extract_strided_slice %97 {offsets = [0, 0], sizes = [1, 64], strides = [1, 1]} : vector<1x192xf32> to vector<1x64xf32>
    %101 = vector.extract_strided_slice %97 {offsets = [0, 64], sizes = [1, 64], strides = [1, 1]} : vector<1x192xf32> to vector<1x64xf32>
    %102 = vector.extract_strided_slice %97 {offsets = [0, 128], sizes = [1, 64], strides = [1, 1]} : vector<1x192xf32> to vector<1x64xf32>
    %103 = arith.mulf %101, %82 : vector<1x64xf32>
    %104 = arith.mulf %100, %99 : vector<1x64xf32>
    %105 = arith.addf %103, %104 : vector<1x64xf32>
    %106 = math.tanh %105 : vector<1x64xf32>
    %107 = arith.mulf %102, %106 : vector<1x64xf32>
    %108 = vector.extract_strided_slice %107 {offsets = [0, 0], sizes = [1, 32], strides = [1, 1]} : vector<1x64xf32> to vector<1x32xf32>
    %c3 = arith.constant 3 : index
    %c0_26 = arith.constant 0 : index
    %109 = vector.load %arg5[%c3, %c0_26] : memref<8x64xf32, #tpu.memory_space<vmem>>, vector<1x32xf32>
    tpu.vector_store %arg5[%c3, %c0_26], %108 {strides = array<i32>} : memref<8x64xf32, #tpu.memory_space<vmem>>, vector<1x32xf32>,
    %110 = vector.extract_strided_slice %107 {offsets = [0, 32], sizes = [1, 32], strides = [1, 1]} : vector<1x64xf32> to vector<1x32xf32>
    %c4 = arith.constant 4 : index
    %c32_27 = arith.constant 32 : index
    %111 = vector.load %arg5[%c4, %c32_27] : memref<8x64xf32, #tpu.memory_space<vmem>>, vector<1x32xf32>
    tpu.vector_store %arg5[%c4, %c32_27], %110 {strides = array<i32>} : memref<8x64xf32, #tpu.memory_space<vmem>>, vector<1x32xf32>,
    %112 = vector.extract_strided_slice %16 {offsets = [4, 0], sizes = [1, 256], strides = [1, 1]} : vector<8x256xf32> to vector<1x256xf32>
    %cst_28 = arith.constant dense<0.000000e+00> : vector<1x256xf32>
    %113 = tpu.matmul %107, %17, %cst_28 {dimension_numbers = #tpu.dot_dimension_numbers<[1], [0], [0], [1], [0, 0, 1, 1], [], []>} : vector<1x64xf32>, vector<64x256xf32>, vector<1x256xf32> -> vector<1x256xf32>
    %114 = arith.addf %112, %113 : vector<1x256xf32>
    %115 = vector.extract_strided_slice %114 {offsets = [0, 0], sizes = [1, 192], strides = [1, 1]} : vector<1x256xf32> to vector<1x192xf32>
    %116 = arith.negf %115 : vector<1x192xf32>
    %117 = math.exp %116 : vector<1x192xf32>
    %cst_29 = arith.constant 1.000000e+00 : f32
    %118 = vector.broadcast %cst_29 : f32 to vector<1x192xf32>
    %119 = arith.addf %118, %117 : vector<1x192xf32>
    %120 = arith.divf %118, %119 : vector<1x192xf32>
    %121 = vector.extract_strided_slice %114 {offsets = [0, 192], sizes = [1, 64], strides = [1, 1]} : vector<1x256xf32> to vector<1x64xf32>
    %122 = math.tanh %121 : vector<1x64xf32>
    %123 = vector.extract_strided_slice %120 {offsets = [0, 0], sizes = [1, 64], strides = [1, 1]} : vector<1x192xf32> to vector<1x64xf32>
    %124 = vector.extract_strided_slice %120 {offsets = [0, 64], sizes = [1, 64], strides = [1, 1]} : vector<1x192xf32> to vector<1x64xf32>
    %125 = vector.extract_strided_slice %120 {offsets = [0, 128], sizes = [1, 64], strides = [1, 1]} : vector<1x192xf32> to vector<1x64xf32>
    %126 = arith.mulf %124, %105 : vector<1x64xf32>
    %127 = arith.mulf %123, %122 : vector<1x64xf32>
    %128 = arith.addf %126, %127 : vector<1x64xf32>
    %129 = math.tanh %128 : vector<1x64xf32>
    %130 = arith.mulf %125, %129 : vector<1x64xf32>
    %131 = vector.extract_strided_slice %130 {offsets = [0, 0], sizes = [1, 32], strides = [1, 1]} : vector<1x64xf32> to vector<1x32xf32>
    %c4_30 = arith.constant 4 : index
    %c0_31 = arith.constant 0 : index
    %132 = vector.load %arg5[%c4_30, %c0_31] : memref<8x64xf32, #tpu.memory_space<vmem>>, vector<1x32xf32>
    tpu.vector_store %arg5[%c4_30, %c0_31], %131 {strides = array<i32>} : memref<8x64xf32, #tpu.memory_space<vmem>>, vector<1x32xf32>,
    %133 = vector.extract_strided_slice %130 {offsets = [0, 32], sizes = [1, 32], strides = [1, 1]} : vector<1x64xf32> to vector<1x32xf32>
    %c3_32 = arith.constant 3 : index
    %c32_33 = arith.constant 32 : index
    %134 = vector.load %arg5[%c3_32, %c32_33] : memref<8x64xf32, #tpu.memory_space<vmem>>, vector<1x32xf32>
    tpu.vector_store %arg5[%c3_32, %c32_33], %133 {strides = array<i32>} : memref<8x64xf32, #tpu.memory_space<vmem>>, vector<1x32xf32>,
    %135 = vector.extract_strided_slice %16 {offsets = [5, 0], sizes = [1, 256], strides = [1, 1]} : vector<8x256xf32> to vector<1x256xf32>
    %cst_34 = arith.constant dense<0.000000e+00> : vector<1x256xf32>
    %136 = tpu.matmul %130, %17, %cst_34 {dimension_numbers = #tpu.dot_dimension_numbers<[1], [0], [0], [1], [0, 0, 1, 1], [], []>} : vector<1x64xf32>, vector<64x256xf32>, vector<1x256xf32> -> vector<1x256xf32>
    %137 = arith.addf %135, %136 : vector<1x256xf32>
    %138 = vector.extract_strided_slice %137 {offsets = [0, 0], sizes = [1, 192], strides = [1, 1]} : vector<1x256xf32> to vector<1x192xf32>
    %139 = arith.negf %138 : vector<1x192xf32>
    %140 = math.exp %139 : vector<1x192xf32>
    %cst_35 = arith.constant 1.000000e+00 : f32
    %141 = vector.broadcast %cst_35 : f32 to vector<1x192xf32>
    %142 = arith.addf %141, %140 : vector<1x192xf32>
    %143 = arith.divf %141, %142 : vector<1x192xf32>
    %144 = vector.extract_strided_slice %137 {offsets = [0, 192], sizes = [1, 64], strides = [1, 1]} : vector<1x256xf32> to vector<1x64xf32>
    %145 = math.tanh %144 : vector<1x64xf32>
    %146 = vector.extract_strided_slice %143 {offsets = [0, 0], sizes = [1, 64], strides = [1, 1]} : vector<1x192xf32> to vector<1x64xf32>
    %147 = vector.extract_strided_slice %143 {offsets = [0, 64], sizes = [1, 64], strides = [1, 1]} : vector<1x192xf32> to vector<1x64xf32>
    %148 = vector.extract_strided_slice %143 {offsets = [0, 128], sizes = [1, 64], strides = [1, 1]} : vector<1x192xf32> to vector<1x64xf32>
    %149 = arith.mulf %147, %128 : vector<1x64xf32>
    %150 = arith.mulf %146, %145 : vector<1x64xf32>
    %151 = arith.addf %149, %150 : vector<1x64xf32>
    %152 = math.tanh %151 : vector<1x64xf32>
    %153 = arith.mulf %148, %152 : vector<1x64xf32>
    %154 = vector.extract_strided_slice %153 {offsets = [0, 0], sizes = [1, 32], strides = [1, 1]} : vector<1x64xf32> to vector<1x32xf32>
    %c5_36 = arith.constant 5 : index
    %c0_37 = arith.constant 0 : index
    %155 = vector.load %arg5[%c5_36, %c0_37] : memref<8x64xf32, #tpu.memory_space<vmem>>, vector<1x32xf32>
    tpu.vector_store %arg5[%c5_36, %c0_37], %154 {strides = array<i32>} : memref<8x64xf32, #tpu.memory_space<vmem>>, vector<1x32xf32>,
    %156 = vector.extract_strided_slice %153 {offsets = [0, 32], sizes = [1, 32], strides = [1, 1]} : vector<1x64xf32> to vector<1x32xf32>
    %c2_38 = arith.constant 2 : index
    %c32_39 = arith.constant 32 : index
    %157 = vector.load %arg5[%c2_38, %c32_39] : memref<8x64xf32, #tpu.memory_space<vmem>>, vector<1x32xf32>
    tpu.vector_store %arg5[%c2_38, %c32_39], %156 {strides = array<i32>} : memref<8x64xf32, #tpu.memory_space<vmem>>, vector<1x32xf32>,
    %158 = vector.extract_strided_slice %16 {offsets = [6, 0], sizes = [1, 256], strides = [1, 1]} : vector<8x256xf32> to vector<1x256xf32>
    %cst_40 = arith.constant dense<0.000000e+00> : vector<1x256xf32>
    %159 = tpu.matmul %153, %17, %cst_40 {dimension_numbers = #tpu.dot_dimension_numbers<[1], [0], [0], [1], [0, 0, 1, 1], [], []>} : vector<1x64xf32>, vector<64x256xf32>, vector<1x256xf32> -> vector<1x256xf32>
    %160 = arith.addf %158, %159 : vector<1x256xf32>
    %161 = vector.extract_strided_slice %160 {offsets = [0, 0], sizes = [1, 192], strides = [1, 1]} : vector<1x256xf32> to vector<1x192xf32>
    %162 = arith.negf %161 : vector<1x192xf32>
    %163 = math.exp %162 : vector<1x192xf32>
    %cst_41 = arith.constant 1.000000e+00 : f32
    %164 = vector.broadcast %cst_41 : f32 to vector<1x192xf32>
    %165 = arith.addf %164, %163 : vector<1x192xf32>
    %166 = arith.divf %164, %165 : vector<1x192xf32>
    %167 = vector.extract_strided_slice %160 {offsets = [0, 192], sizes = [1, 64], strides = [1, 1]} : vector<1x256xf32> to vector<1x64xf32>
    %168 = math.tanh %167 : vector<1x64xf32>
    %169 = vector.extract_strided_slice %166 {offsets = [0, 0], sizes = [1, 64], strides = [1, 1]} : vector<1x192xf32> to vector<1x64xf32>
    %170 = vector.extract_strided_slice %166 {offsets = [0, 64], sizes = [1, 64], strides = [1, 1]} : vector<1x192xf32> to vector<1x64xf32>
    %171 = vector.extract_strided_slice %166 {offsets = [0, 128], sizes = [1, 64], strides = [1, 1]} : vector<1x192xf32> to vector<1x64xf32>
    %172 = arith.mulf %170, %151 : vector<1x64xf32>
    %173 = arith.mulf %169, %168 : vector<1x64xf32>
    %174 = arith.addf %172, %173 : vector<1x64xf32>
    %175 = math.tanh %174 : vector<1x64xf32>
    %176 = arith.mulf %171, %175 : vector<1x64xf32>
    %177 = vector.extract_strided_slice %176 {offsets = [0, 0], sizes = [1, 32], strides = [1, 1]} : vector<1x64xf32> to vector<1x32xf32>
    %c6_42 = arith.constant 6 : index
    %c0_43 = arith.constant 0 : index
    %178 = vector.load %arg5[%c6_42, %c0_43] : memref<8x64xf32, #tpu.memory_space<vmem>>, vector<1x32xf32>
    tpu.vector_store %arg5[%c6_42, %c0_43], %177 {strides = array<i32>} : memref<8x64xf32, #tpu.memory_space<vmem>>, vector<1x32xf32>,
    %179 = vector.extract_strided_slice %176 {offsets = [0, 32], sizes = [1, 32], strides = [1, 1]} : vector<1x64xf32> to vector<1x32xf32>
    %c1_44 = arith.constant 1 : index
    %c32_45 = arith.constant 32 : index
    %180 = vector.load %arg5[%c1_44, %c32_45] : memref<8x64xf32, #tpu.memory_space<vmem>>, vector<1x32xf32>
    tpu.vector_store %arg5[%c1_44, %c32_45], %179 {strides = array<i32>} : memref<8x64xf32, #tpu.memory_space<vmem>>, vector<1x32xf32>,
    %181 = vector.extract_strided_slice %16 {offsets = [7, 0], sizes = [1, 256], strides = [1, 1]} : vector<8x256xf32> to vector<1x256xf32>
    %cst_46 = arith.constant dense<0.000000e+00> : vector<1x256xf32>
    %182 = tpu.matmul %176, %17, %cst_46 {dimension_numbers = #tpu.dot_dimension_numbers<[1], [0], [0], [1], [0, 0, 1, 1], [], []>} : vector<1x64xf32>, vector<64x256xf32>, vector<1x256xf32> -> vector<1x256xf32>
    %183 = arith.addf %181, %182 : vector<1x256xf32>
    %184 = vector.extract_strided_slice %183 {offsets = [0, 0], sizes = [1, 192], strides = [1, 1]} : vector<1x256xf32> to vector<1x192xf32>
    %185 = arith.negf %184 : vector<1x192xf32>
    %186 = math.exp %185 : vector<1x192xf32>
    %cst_47 = arith.constant 1.000000e+00 : f32
    %187 = vector.broadcast %cst_47 : f32 to vector<1x192xf32>
    %188 = arith.addf %187, %186 : vector<1x192xf32>
    %189 = arith.divf %187, %188 : vector<1x192xf32>
    %190 = vector.extract_strided_slice %183 {offsets = [0, 192], sizes = [1, 64], strides = [1, 1]} : vector<1x256xf32> to vector<1x64xf32>
    %191 = math.tanh %190 : vector<1x64xf32>
    %192 = vector.extract_strided_slice %189 {offsets = [0, 0], sizes = [1, 64], strides = [1, 1]} : vector<1x192xf32> to vector<1x64xf32>
    %193 = vector.extract_strided_slice %189 {offsets = [0, 64], sizes = [1, 64], strides = [1, 1]} : vector<1x192xf32> to vector<1x64xf32>
    %194 = vector.extract_strided_slice %189 {offsets = [0, 128], sizes = [1, 64], strides = [1, 1]} : vector<1x192xf32> to vector<1x64xf32>
    %195 = arith.mulf %193, %174 : vector<1x64xf32>
    %196 = arith.mulf %192, %191 : vector<1x64xf32>
    %197 = arith.addf %195, %196 : vector<1x64xf32>
    %198 = math.tanh %197 : vector<1x64xf32>
    %199 = arith.mulf %194, %198 : vector<1x64xf32>
    %200 = vector.extract_strided_slice %199 {offsets = [0, 0], sizes = [1, 32], strides = [1, 1]} : vector<1x64xf32> to vector<1x32xf32>
    %c7_48 = arith.constant 7 : index
    %c0_49 = arith.constant 0 : index
    %201 = vector.load %arg5[%c7_48, %c0_49] : memref<8x64xf32, #tpu.memory_space<vmem>>, vector<1x32xf32>
    tpu.vector_store %arg5[%c7_48, %c0_49], %200 {strides = array<i32>} : memref<8x64xf32, #tpu.memory_space<vmem>>, vector<1x32xf32>,
    %202 = vector.extract_strided_slice %199 {offsets = [0, 32], sizes = [1, 32], strides = [1, 1]} : vector<1x64xf32> to vector<1x32xf32>
    %c0_50 = arith.constant 0 : index
    %c32_51 = arith.constant 32 : index
    %203 = vector.load %arg5[%c0_50, %c32_51] : memref<8x64xf32, #tpu.memory_space<vmem>>, vector<1x32xf32>
    tpu.vector_store %arg5[%c0_50, %c32_51], %202 {strides = array<i32>} : memref<8x64xf32, #tpu.memory_space<vmem>>, vector<1x32xf32>,
    return
  }
}

</mosaic_0001>

<llo_original>
// kernel: tpu_custom_call.1
$region0: #{tpu_custom_call.1}
  #allocation0 [shape = 'u32[]', space=smem, size = 0x4, offset = 0x4, fixed_abs, tag = 'smem constant byte address 0x4 - core index']
  #allocation1 [shape = 'u32[72,128]{1,0:T(1,128)}', space=vmem, size = 0x9000, scoped, tag = 'internal scratch']
  %s0 = inlined_call_operand.vmem [shape: s32[8,1], index: 0, kind: input, shape index: {}]
  %s1 = inlined_call_operand.vmem [shape: s32[8,1], index: 1, kind: input, shape index: {}]
  %s2 = inlined_call_operand.hbm [shape: f32[100,256], index: 2, kind: input, shape index: {}]
  %s3 = inlined_call_operand.hbm [shape: f32[64,256], index: 3, kind: input, shape index: {}]
  %s4 = inlined_call_operand.vmem [shape: f32[2,64], index: 4, kind: input, shape index: {}]
  %s5 = inlined_call_operand.hbm [shape: f32[8,64], index: 5, kind: output, shape index: {}]
  %s6 = sld [smem:[#allocation0]]
  $region38: #{tpu_custom_call.1} parent=0
    _
  %s8 = ssub.s32 1, %s6
  %s9 = scalar_select 0, %s8, %s6
  $region1: #{tpu_custom_call.1} parent=0
    #allocation2 [shape = 'u8[106496]{0}', space=vmem, size = 0x1a000, scoped, tag = 'input window, operand 2, single buffered']
    #allocation3 [shape = 's32[1]{0}', space=sflag, size = 0x4, scoped, tag = 'scoped memory for tpu_custom_call.1']
    #allocation4 [shape = 's32[1]{0}', space=sflag, size = 0x4, scoped, tag = 'scoped memory for tpu_custom_call.1']
    #allocation5 [shape = 'u8[65536]{0}', space=vmem, size = 0x10000, scoped, tag = 'input window, operand 3, single buffered']
    #allocation6 [shape = 's32[1]{0}', space=sflag, size = 0x4, scoped, tag = 'scoped memory for tpu_custom_call.1']
    #allocation7 [shape = 'u8[4096]{0}', space=vmem, size = 0x1000, scoped, tag = 'output window, operand 0, single buffered']
    %10 = vsyncpa [#allocation3], 0
    %11 = vsyncpa [#allocation6], 0
    %12 = vsyncpa [#allocation4], 0
    // Predicated region
    $region2: #{tpu_custom_call.1} parent=1 // pred_check
      _
    $region3: #{tpu_custom_call.1} parent=1 // pred_check_branch
      %14 = sbr.rel (0) target = $region5
    $region4: #{tpu_custom_call.1} parent=1 // pred_region
      _
    $region5: #{tpu_custom_call.1} parent=1 // pred_fallthru
      _
    // Predicated region
    $region6: #{tpu_custom_call.1} parent=1 // pred_check
      _
    $region7: #{tpu_custom_call.1} parent=1 // pred_check_branch
      %16 = sbr.rel (0) target = $region9
    $region8: #{tpu_custom_call.1} parent=1 // pred_region
      _
    $region9: #{tpu_custom_call.1} parent=1 // pred_fallthru
      _
    // Predicated region
    $region10: #{tpu_custom_call.1} parent=1 // pred_check
      _
    $region11: #{tpu_custom_call.1} parent=1 // pred_check_branch
      %18 = sbr.rel (0) target = $region13
    $region12: #{tpu_custom_call.1} parent=1 // pred_region
      %20 = vsyncadd [#allocation3], 0
      %s21 = sshll.u32 %s2, 4
      %s22 = int_to_ptr.hbm [resolvable:$true] %s21
      %s23 = sshll.u32 [#allocation2], 4
      %s24 = int_to_ptr.vmem [resolvable:$true] %s23
      %29 = dma.hbm_to_vmem [thread:$0]  %s22, 3328, %s24, [#allocation3], 256, 256, 16
    $region13: #{tpu_custom_call.1} parent=1 // pred_fallthru
      _
    // Predicated region
    $region14: #{tpu_custom_call.1} parent=1 // pred_check
      _
    $region15: #{tpu_custom_call.1} parent=1 // pred_check_branch
      %31 = sbr.rel (0) target = $region17
    $region16: #{tpu_custom_call.1} parent=1 // pred_region
      %33 = vsyncadd [#allocation6], 0
      %s34 = sshll.u32 %s3, 4
      %s35 = int_to_ptr.hbm [resolvable:$true] %s34
      %s36 = sshll.u32 [#allocation5], 4
      %s37 = int_to_ptr.vmem [resolvable:$true] %s36
      %42 = dma.hbm_to_vmem [thread:$0]  %s35, 2048, %s37, [#allocation6], 256, 256, 16
    $region17: #{tpu_custom_call.1} parent=1 // pred_fallthru
      _
    // Predicated region
    $region18: #{tpu_custom_call.1} parent=1 // pred_check
      _
    $region19: #{tpu_custom_call.1} parent=1 // pred_check_branch
      %44 = sbr.rel (0) target = $region21
    $region20: #{tpu_custom_call.1} parent=1 // pred_region
      _
    $region21: #{tpu_custom_call.1} parent=1 // pred_fallthru
      _
    // Predicated region
    $region22: #{tpu_custom_call.1} parent=1 // pred_check
      _
    $region23: #{tpu_custom_call.1} parent=1 // pred_check_branch
      %46 = sbr.rel (0) target = $region25
    $region24: #{tpu_custom_call.1} parent=1 // pred_region
      %48 = dma.done [#allocation3], 3328
    $region25: #{tpu_custom_call.1} parent=1 // pred_fallthru
      _
    // Predicated region
    $region26: #{tpu_custom_call.1} parent=1 // pred_check
      _
    $region27: #{tpu_custom_call.1} parent=1 // pred_check_branch
      %50 = sbr.rel (0) target = $region29
    $region28: #{tpu_custom_call.1} parent=1 // pred_region
      %52 = dma.done [#allocation6], 2048
    $region29: #{tpu_custom_call.1} parent=1 // pred_fallthru
      _
    %v53 = vld [vmem:[%s0] sm:$0xff]
    %v54 = vld [vmem:[%s1] sm:$0xff]
    %v55 = vlaneseq
    %v56 = vand.u32 %v55, 127
    %vm57 = vcmp.lt.s32.totalorder %v56, 50
    %v58 = vadd.s32 %v54, 50
    %59 = vset.pattern.permute.xlu0 0
    %60 = vperm.xlu0 %59, %v53
    %v61 = vpop.permute.xlu0 %60
    %62 = vset.pattern.permute.xlu0 0
    %63 = vperm.xlu0 %62, %v58
    %v64 = vpop.permute.xlu0 %63
    %v65 = vsel %vm57, %v61, %v64
    %vm66 = vcmp.eq.s32.totalorder %v56, %v65
    %v67 = vsel %vm66, 1, 0
    %v68 = vcvt.s32.f32 %v67
    %v69 = vld [vmem:[#allocation2] sm:$0xff]
    %v70 = vld [vmem:[#allocation2 + $0x8] sm:$0xff]
    %v71 = vld [vmem:[#allocation2 + $0x10] sm:$0xff]
    %v72 = vld [vmem:[#allocation2 + $0x18] sm:$0xff]
    %v73 = vld [vmem:[#allocation2 + $0x20] sm:$0xff]
    %v74 = vld [vmem:[#allocation2 + $0x28] sm:$0xff]
    %v75 = vld [vmem:[#allocation2 + $0x30] sm:$0xff]
    %v76 = vld [vmem:[#allocation2 + $0x38] sm:$0xff]
    %v77 = vld [vmem:[#allocation2 + $0x40] sm:$0xff]
    %v78 = vld [vmem:[#allocation2 + $0x48] sm:$0xff]
    %v79 = vld [vmem:[#allocation2 + $0x50] sm:$0xff]
    %v80 = vld [vmem:[#allocation2 + $0x58] sm:$0xff]
    %v81 = vld [vmem:[#allocation2 + $0x60] sm:$0xff]
    %v82 = vld [vmem:[#allocation2 + $0x68] sm:$0xff]
    %v83 = vld [vmem:[#allocation2 + $0x70] sm:$0xff]
    %v84 = vld [vmem:[#allocation2 + $0x78] sm:$0xff]
    %v85 = vld [vmem:[#allocation2 + $0x80] sm:$0xff]
    %v86 = vld [vmem:[#allocation2 + $0x88] sm:$0xff]
    %v87 = vld [vmem:[#allocation2 + $0x90] sm:$0xff]
    %v88 = vld [vmem:[#allocation2 + $0x98] sm:$0xff]
    %v89 = vld [vmem:[#allocation2 + $0xa0] sm:$0xff]
    %v90 = vld [vmem:[#allocation2 + $0xa8] sm:$0xff]
    %v91 = vld [vmem:[#allocation2 + $0xb0] sm:$0xff]
    %v92 = vld [vmem:[#allocation2 + $0xb8] sm:$0xff]
    %v93 = vld [vmem:[#allocation2 + $0xc0] sm:$0xf]
    %v94 = vld [vmem:[#allocation2 + $0xc8] sm:$0xf]
    %vm95 = vcmask 818176
    %v97 = vsel %vm95, %v68, 0
    %vm99 = vcmask 1043456
    %v101 = vsel %vm99, %v93, 0
    %v104 = vsel %vm99, %v94, 0
    %106 = vmatpush.msra.mxu0 0.0
    %107 = vmatpush.msra.mxu0 0.0
    %108 = vmatpush.msra.mxu0 0.0
    %109 = vmatpush.msra.mxu0 %v101
    %110 = vmatpush.msra.mxu0 %v91
    %111 = vmatpush.msra.mxu0 %v89
    %112 = vmatpush.msra.mxu0 %v87
    %113 = vmatpush.msra.mxu0 %v85
    %114 = vmatpush.msra.mxu0 %v83
    %115 = vmatpush.msra.mxu0 %v81
    %116 = vmatpush.msra.mxu0 %v79
    %117 = vmatpush.msra.mxu0 %v77
    %118 = vmatpush.msra.mxu0 %v75
    %119 = vmatpush.msra.mxu0 %v73
    %120 = vmatpush.msra.mxu0 %v71
    %121 = vmatpush.msra.mxu0 %v69
    %122 = vmatmul.f32.gmra.mxu0 %v97
    %v123 = vpop.f32.mrf.mxu0
    %v124 = vadd.f32 0.0, %v123
    %125 = vdwg.mxu0
    %126 = vmatpush.msra.mxu0 0.0
    %127 = vmatpush.msra.mxu0 0.0
    %128 = vmatpush.msra.mxu0 0.0
    %129 = vmatpush.msra.mxu0 %v104
    %130 = vmatpush.msra.mxu0 %v92
    %131 = vmatpush.msra.mxu0 %v90
    %132 = vmatpush.msra.mxu0 %v88
    %133 = vmatpush.msra.mxu0 %v86
    %134 = vmatpush.msra.mxu0 %v84
    %135 = vmatpush.msra.mxu0 %v82
    %136 = vmatpush.msra.mxu0 %v80
    %137 = vmatpush.msra.mxu0 %v78
    %138 = vmatpush.msra.mxu0 %v76
    %139 = vmatpush.msra.mxu0 %v74
    %140 = vmatpush.msra.mxu0 %v72
    %141 = vmatpush.msra.mxu0 %v70
    %142 = vmatmul.f32.gmra.mxu0 %v97
    %v143 = vpop.f32.mrf.mxu0
    %v144 = vadd.f32 0.0, %v143
    %145 = vdwg.mxu0
    %v146 = vld [vmem:[#allocation5] sm:$0xff]
    %v147 = vld [vmem:[#allocation5 + $0x8] sm:$0xff]
    %v148 = vld [vmem:[#allocation5 + $0x10] sm:$0xff]
    %v149 = vld [vmem:[#allocation5 + $0x18] sm:$0xff]
    %v150 = vld [vmem:[#allocation5 + $0x20] sm:$0xff]
    %v151 = vld [vmem:[#allocation5 + $0x28] sm:$0xff]
    %v152 = vld [vmem:[#allocation5 + $0x30] sm:$0xff]
    %v153 = vld [vmem:[#allocation5 + $0x38] sm:$0xff]
    %v154 = vld [vmem:[#allocation5 + $0x40] sm:$0xff]
    %v155 = vld [vmem:[#allocation5 + $0x48] sm:$0xff]
    %v156 = vld [vmem:[#allocation5 + $0x50] sm:$0xff]
    %v157 = vld [vmem:[#allocation5 + $0x58] sm:$0xff]
    %v158 = vld [vmem:[#allocation5 + $0x60] sm:$0xff]
    %v159 = vld [vmem:[#allocation5 + $0x68] sm:$0xff]
    %v160 = vld [vmem:[#allocation5 + $0x70] sm:$0xff]
    %v161 = vld [vmem:[#allocation5 + $0x78] sm:$0xff]
    %v162 = vld [vmem:[%s4] sm:$0x1]
    %v163 = vld [vmem:[%s4 + $0x1] sm:$0x1]
    %vm164 = vcmask 523264
    %v166 = vsel %vm164, %v162, 0
    %168 = vmatpush.msra.mxu0 0.0
    %169 = vmatpush.msra.mxu0 0.0
    %170 = vmatpush.msra.mxu0 0.0
    %171 = vmatpush.msra.mxu0 0.0
    %172 = vmatpush.msra.mxu0 0.0
    %173 = vmatpush.msra.mxu0 0.0
    %174 = vmatpush.msra.mxu0 0.0
    %175 = vmatpush.msra.mxu0 0.0
    %176 = vmatpush.msra.mxu0 %v160
    %177 = vmatpush.msra.mxu0 %v158
    %178 = vmatpush.msra.mxu0 %v156
    %179 = vmatpush.msra.mxu0 %v154
    %180 = vmatpush.msra.mxu0 %v152
    %181 = vmatpush.msra.mxu0 %v150
    %182 = vmatpush.msra.mxu0 %v148
    %183 = vmatpush.msra.mxu0 %v146
    %184 = vmatmul.f32.gmra.mxu0 %v166
    %v185 = vpop.f32.mrf.mxu0
    %v186 = vadd.f32 0.0, %v185
    %187 = vdwg.mxu0
    %188 = vmatpush.msra.mxu0 0.0
    %189 = vmatpush.msra.mxu0 0.0
    %190 = vmatpush.msra.mxu0 0.0
    %191 = vmatpush.msra.mxu0 0.0
    %192 = vmatpush.msra.mxu0 0.0
    %193 = vmatpush.msra.mxu0 0.0
    %194 = vmatpush.msra.mxu0 0.0
    %195 = vmatpush.msra.mxu0 0.0
    %196 = vmatpush.msra.mxu0 %v161
    %197 = vmatpush.msra.mxu0 %v159
    %198 = vmatpush.msra.mxu0 %v157
    %199 = vmatpush.msra.mxu0 %v155
    %200 = vmatpush.msra.mxu0 %v153
    %201 = vmatpush.msra.mxu0 %v151
    %202 = vmatpush.msra.mxu0 %v149
    %203 = vmatpush.msra.mxu0 %v147
    %204 = vmatmul.f32.gmra.mxu0 %v166
    %v205 = vpop.f32.mrf.mxu0
    %v206 = vadd.f32 0.0, %v205
    %207 = vdwg.mxu0
    %v208 = vadd.f32 %v124, %v186
    %v209 = vadd.f32 %v144, %v206
    %v210 = vxor.u32 %v208, 2147483648
    %v211 = vxor.u32 %v209, 2147483648
    %v212 = vmul.f32 %v210, 1.442695
    %v213 = vpow.pop %v212
    %v214 = vmul.f32 %v211, 1.442695
    %v215 = vpow.pop %v214
    %v216 = vadd.f32 %v213, 1.0
    %v217 = vadd.f32 %v215, 1.0
    %v218 = vrcp.pop %v216
    %v219 = vmul.f32 %v216, %v218
    %v220 = vsub.f32 1.0, %v219
    %v221 = vmul.f32 %v218, %v220
    %v222 = vadd.f32 %v218, %v221
    %vm223 = vweird.f32 %v216
    %vm224 = vweird.f32 %v218
    %vm225 = vmor %vm223, %vm224
    %v226 = vsel %vm225, %v218, %v222
    %v227 = vand.u32 2147483647, %v216
    %vm228 = vcmp.eq.f32.partialorder %v227, 8.507059e+37
    %v229 = vand.u32 %v216, 2147483648
    %v230 = vor.u32 1.1754944e-38, %v229
    %v231 = vsel %vm228, %v230, %v226
    %v232 = vmul.f32 1.0, %v231
    %v233 = vrcp.pop %v217
    %v234 = vmul.f32 %v217, %v233
    %v235 = vsub.f32 1.0, %v234
    %v236 = vmul.f32 %v233, %v235
    %v237 = vadd.f32 %v233, %v236
    %vm238 = vweird.f32 %v217
    %vm239 = vweird.f32 %v233
    %vm240 = vmor %vm238, %vm239
    %v241 = vsel %vm240, %v233, %v237
    %v242 = vand.u32 2147483647, %v217
    %vm243 = vcmp.eq.f32.partialorder %v242, 8.507059e+37
    %v244 = vand.u32 %v217, 2147483648
    %v245 = vor.u32 1.1754944e-38, %v244
    %v246 = vsel %vm243, %v245, %v241
    %v247 = vmul.f32 1.0, %v246
    %v248 = vtanh.pop %v209
    %250 = vrot.lane.b32.xlu0 %v163, 64
    %v251 = vpop.permute.xlu0 %250
    %v253 = vmul.f32 %v232, %v251
    %255 = vrot.lane.b32.xlu0 %v248, 64
    %v256 = vpop.permute.xlu0 %255
    %v258 = vmul.f32 %v232, %v256
    %260 = vrot.lane.b32.xlu0 %v258, 64
    %v261 = vpop.permute.xlu0 %260
    %v263 = vadd.f32 %v253, %v261
    %v264 = vtanh.pop %v263
    %266 = vrot.lane.b32.xlu0 %v264, 64
    %v267 = vpop.permute.xlu0 %266
    %v269 = vmul.f32 %v247, %v267
    %vm270 = vcmask 253952
    %271 = vst.msk [vmem:[#allocation7] sm:$0x1] %vm270, %v269
    %vm272 = vcmask 516352
    %273 = vst.msk [vmem:[#allocation7 + $0x7] sm:$0x1] %vm272, %v269
    %v275 = vsel %vm164, %v269, 0
    %277 = vmatpush.msra.mxu0 0.0
    %278 = vmatpush.msra.mxu0 0.0
    %279 = vmatpush.msra.mxu0 0.0
    %280 = vmatpush.msra.mxu0 0.0
    %281 = vmatpush.msra.mxu0 0.0
    %282 = vmatpush.msra.mxu0 0.0
    %283 = vmatpush.msra.mxu0 0.0
    %284 = vmatpush.msra.mxu0 0.0
    %285 = vmatpush.msra.mxu0 %v160
    %286 = vmatpush.msra.mxu0 %v158
    %287 = vmatpush.msra.mxu0 %v156
    %288 = vmatpush.msra.mxu0 %v154
    %289 = vmatpush.msra.mxu0 %v152
    %290 = vmatpush.msra.mxu0 %v150
    %291 = vmatpush.msra.mxu0 %v148
    %292 = vmatpush.msra.mxu0 %v146
    %293 = vmatmul.f32.gmra.mxu0 %v275
    %v294 = vpop.f32.mrf.mxu0
    %v295 = vadd.f32 0.0, %v294
    %296 = vdwg.mxu0
    %297 = vmatpush.msra.mxu0 0.0
    %298 = vmatpush.msra.mxu0 0.0
    %299 = vmatpush.msra.mxu0 0.0
    %300 = vmatpush.msra.mxu0 0.0
    %301 = vmatpush.msra.mxu0 0.0
    %302 = vmatpush.msra.mxu0 0.0
    %303 = vmatpush.msra.mxu0 0.0
    %304 = vmatpush.msra.mxu0 0.0
    %305 = vmatpush.msra.mxu0 %v161
    %306 = vmatpush.msra.mxu0 %v159
    %307 = vmatpush.msra.mxu0 %v157
    %308 = vmatpush.msra.mxu0 %v155
    %309 = vmatpush.msra.mxu0 %v153
    %310 = vmatpush.msra.mxu0 %v151
    %311 = vmatpush.msra.mxu0 %v149
    %312 = vmatpush.msra.mxu0 %v147
    %313 = vmatmul.f32.gmra.mxu0 %v275
    %v314 = vpop.f32.mrf.mxu0
    %v315 = vadd.f32 0.0, %v314
    %316 = vdwg.mxu0
    %v319 = vrot.slane %v295, 7
    %v320 = vrot.slane %v315, 7
    %v323 = vadd.f32 %v124, %v319
    %v324 = vadd.f32 %v144, %v320
    %v325 = vxor.u32 %v323, 2147483648
    %v326 = vxor.u32 %v324, 2147483648
    %v327 = vmul.f32 %v325, 1.442695
    %v328 = vpow.pop %v327
    %v329 = vmul.f32 %v326, 1.442695
    %v330 = vpow.pop %v329
    %v331 = vadd.f32 %v328, 1.0
    %v332 = vadd.f32 %v330, 1.0
    %v333 = vrcp.pop %v331
    %v334 = vmul.f32 %v331, %v333
    %v335 = vsub.f32 1.0, %v334
    %v336 = vmul.f32 %v333, %v335
    %v337 = vadd.f32 %v333, %v336
    %vm338 = vweird.f32 %v331
    %vm339 = vweird.f32 %v333
    %vm340 = vmor %vm338, %vm339
    %v341 = vsel %vm340, %v333, %v337
    %v342 = vand.u32 2147483647, %v331
    %vm343 = vcmp.eq.f32.partialorder %v342, 8.507059e+37
    %v344 = vand.u32 %v331, 2147483648
    %v345 = vor.u32 1.1754944e-38, %v344
    %v346 = vsel %vm343, %v345, %v341
    %v347 = vmul.f32 1.0, %v346
    %v348 = vrcp.pop %v332
    %v349 = vmul.f32 %v332, %v348
    %v350 = vsub.f32 1.0, %v349
    %v351 = vmul.f32 %v348, %v350
    %v352 = vadd.f32 %v348, %v351
    %vm353 = vweird.f32 %v332
    %vm354 = vweird.f32 %v348
    %vm355 = vmor %vm353, %vm354
    %v356 = vsel %vm355, %v348, %v352
    %v357 = vand.u32 2147483647, %v332
    %vm358 = vcmp.eq.f32.partialorder %v357, 8.507059e+37
    %v359 = vand.u32 %v332, 2147483648
    %v360 = vor.u32 1.1754944e-38, %v359
    %v361 = vsel %vm358, %v360, %v356
    %v362 = vmul.f32 1.0, %v361
    %v363 = vtanh.pop %v324
    %v365 = vrot.slane %v263, 7
    %v367 = vmul.f32 %v347, %v365
    %369 = vrot.lane.b32.xlu0 %v363, 64
    %v370 = vpop.permute.xlu0 %369
    %v372 = vmul.f32 %v347, %v370
    %374 = vrot.lane.b32.xlu0 %v372, 64
    %v375 = vpop.permute.xlu0 %374
    %v377 = vadd.f32 %v367, %v375
    %v378 = vtanh.pop %v377
    %380 = vrot.lane.b32.xlu0 %v378, 64
    %v381 = vpop.permute.xlu0 %380
    %v383 = vmul.f32 %v362, %v381
    %vm384 = vcmask 254977
    %385 = vst.msk [vmem:[#allocation7] sm:$0x2] %vm384, %v383
    %vm386 = vcmask 517377
    %387 = vst.msk [vmem:[#allocation7 + $0x5] sm:$0x2] %vm386, %v383
    %v389 = vrot.slane %v383, 1
    %v390 = vsel %vm164, %v389, 0
    %392 = vmatpush.msra.mxu0 0.0
    %393 = vmatpush.msra.mxu0 0.0
    %394 = vmatpush.msra.mxu0 0.0
    %395 = vmatpush.msra.mxu0 0.0
    %396 = vmatpush.msra.mxu0 0.0
    %397 = vmatpush.msra.mxu0 0.0
    %398 = vmatpush.msra.mxu0 0.0
    %399 = vmatpush.msra.mxu0 0.0
    %400 = vmatpush.msra.mxu0 %v160
    %401 = vmatpush.msra.mxu0 %v158
    %402 = vmatpush.msra.mxu0 %v156
    %403 = vmatpush.msra.mxu0 %v154
    %404 = vmatpush.msra.mxu0 %v152
    %405 = vmatpush.msra.mxu0 %v150
    %406 = vmatpush.msra.mxu0 %v148
    %407 = vmatpush.msra.mxu0 %v146
    %408 = vmatmul.f32.gmra.mxu0 %v390
    %v409 = vpop.f32.mrf.mxu0
    %v410 = vadd.f32 0.0, %v409
    %411 = vdwg.mxu0
    %412 = vmatpush.msra.mxu0 0.0
    %413 = vmatpush.msra.mxu0 0.0
    %414 = vmatpush.msra.mxu0 0.0
    %415 = vmatpush.msra.mxu0 0.0
    %416 = vmatpush.msra.mxu0 0.0
    %417 = vmatpush.msra.mxu0 0.0
    %418 = vmatpush.msra.mxu0 0.0
    %419 = vmatpush.msra.mxu0 0.0
    %420 = vmatpush.msra.mxu0 %v161
    %421 = vmatpush.msra.mxu0 %v159
    %422 = vmatpush.msra.mxu0 %v157
    %423 = vmatpush.msra.mxu0 %v155
    %424 = vmatpush.msra.mxu0 %v153
    %425 = vmatpush.msra.mxu0 %v151
    %426 = vmatpush.msra.mxu0 %v149
    %427 = vmatpush.msra.mxu0 %v147
    %428 = vmatmul.f32.gmra.mxu0 %v390
    %v429 = vpop.f32.mrf.mxu0
    %v430 = vadd.f32 0.0, %v429
    %431 = vdwg.mxu0
    %v434 = vrot.slane %v410, 6
    %v435 = vrot.slane %v430, 6
    %v438 = vadd.f32 %v124, %v434
    %v439 = vadd.f32 %v144, %v435
    %v440 = vxor.u32 %v438, 2147483648
    %v441 = vxor.u32 %v439, 2147483648
    %v442 = vmul.f32 %v440, 1.442695
    %v443 = vpow.pop %v442
    %v444 = vmul.f32 %v441, 1.442695
    %v445 = vpow.pop %v444
    %v446 = vadd.f32 %v443, 1.0
    %v447 = vadd.f32 %v445, 1.0
    %v448 = vrcp.pop %v446
    %v449 = vmul.f32 %v446, %v448
    %v450 = vsub.f32 1.0, %v449
    %v451 = vmul.f32 %v448, %v450
    %v452 = vadd.f32 %v448, %v451
    %vm453 = vweird.f32 %v446
    %vm454 = vweird.f32 %v448
    %vm455 = vmor %vm453, %vm454
    %v456 = vsel %vm455, %v448, %v452
    %v457 = vand.u32 2147483647, %v446
    %vm458 = vcmp.eq.f32.partialorder %v457, 8.507059e+37
    %v459 = vand.u32 %v446, 2147483648
    %v460 = vor.u32 1.1754944e-38, %v459
    %v461 = vsel %vm458, %v460, %v456
    %v462 = vmul.f32 1.0, %v461
    %v463 = vrcp.pop %v447
    %v464 = vmul.f32 %v447, %v463
    %v465 = vsub.f32 1.0, %v464
    %v466 = vmul.f32 %v463, %v465
    %v467 = vadd.f32 %v463, %v466
    %vm468 = vweird.f32 %v447
    %vm469 = vweird.f32 %v463
    %vm470 = vmor %vm468, %vm469
    %v471 = vsel %vm470, %v463, %v467
    %v472 = vand.u32 2147483647, %v447
    %vm473 = vcmp.eq.f32.partialorder %v472, 8.507059e+37
    %v474 = vand.u32 %v447, 2147483648
    %v475 = vor.u32 1.1754944e-38, %v474
    %v476 = vsel %vm473, %v475, %v471
    %v477 = vmul.f32 1.0, %v476
    %v478 = vtanh.pop %v439
    %v480 = vrot.slane %v377, 7
    %v482 = vmul.f32 %v462, %v480
    %484 = vrot.lane.b32.xlu0 %v478, 64
    %v485 = vpop.permute.xlu0 %484
    %v487 = vmul.f32 %v462, %v485
    %489 = vrot.lane.b32.xlu0 %v487, 64
    %v490 = vpop.permute.xlu0 %489
    %v492 = vadd.f32 %v482, %v490
    %v493 = vtanh.pop %v492
    %495 = vrot.lane.b32.xlu0 %v493, 64
    %v496 = vpop.permute.xlu0 %495
    %v498 = vmul.f32 %v477, %v496
    %vm499 = vcmask 256002
    %500 = vst.msk [vmem:[#allocation7] sm:$0x4] %vm499, %v498
    %vm501 = vcmask 518402
    %502 = vst.msk [vmem:[#allocation7 + $0x3] sm:$0x4] %vm501, %v498
    %v504 = vrot.slane %v498, 2
    %v505 = vsel %vm164, %v504, 0
    %507 = vmatpush.msra.mxu0 0.0
    %508 = vmatpush.msra.mxu0 0.0
    %509 = vmatpush.msra.mxu0 0.0
    %510 = vmatpush.msra.mxu0 0.0
    %511 = vmatpush.msra.mxu0 0.0
    %512 = vmatpush.msra.mxu0 0.0
    %513 = vmatpush.msra.mxu0 0.0
    %514 = vmatpush.msra.mxu0 0.0
    %515 = vmatpush.msra.mxu0 %v160
    %516 = vmatpush.msra.mxu0 %v158
    %517 = vmatpush.msra.mxu0 %v156
    %518 = vmatpush.msra.mxu0 %v154
    %519 = vmatpush.msra.mxu0 %v152
    %520 = vmatpush.msra.mxu0 %v150
    %521 = vmatpush.msra.mxu0 %v148
    %522 = vmatpush.msra.mxu0 %v146
    %523 = vmatmul.f32.gmra.mxu0 %v505
    %v524 = vpop.f32.mrf.mxu0
    %v525 = vadd.f32 0.0, %v524
    %526 = vdwg.mxu0
    %527 = vmatpush.msra.mxu0 0.0
    %528 = vmatpush.msra.mxu0 0.0
    %529 = vmatpush.msra.mxu0 0.0
    %530 = vmatpush.msra.mxu0 0.0
    %531 = vmatpush.msra.mxu0 0.0
    %532 = vmatpush.msra.mxu0 0.0
    %533 = vmatpush.msra.mxu0 0.0
    %534 = vmatpush.msra.mxu0 0.0
    %535 = vmatpush.msra.mxu0 %v161
    %536 = vmatpush.msra.mxu0 %v159
    %537 = vmatpush.msra.mxu0 %v157
    %538 = vmatpush.msra.mxu0 %v155
    %539 = vmatpush.msra.mxu0 %v153
    %540 = vmatpush.msra.mxu0 %v151
    %541 = vmatpush.msra.mxu0 %v149
    %542 = vmatpush.msra.mxu0 %v147
    %543 = vmatmul.f32.gmra.mxu0 %v505
    %v544 = vpop.f32.mrf.mxu0
    %v545 = vadd.f32 0.0, %v544
    %546 = vdwg.mxu0
    %v549 = vrot.slane %v525, 5
    %v550 = vrot.slane %v545, 5
    %v553 = vadd.f32 %v124, %v549
    %v554 = vadd.f32 %v144, %v550
    %v555 = vxor.u32 %v553, 2147483648
    %v556 = vxor.u32 %v554, 2147483648
    %v557 = vmul.f32 %v555, 1.442695
    %v558 = vpow.pop %v557
    %v559 = vmul.f32 %v556, 1.442695
    %v560 = vpow.pop %v559
    %v561 = vadd.f32 %v558, 1.0
    %v562 = vadd.f32 %v560, 1.0
    %v563 = vrcp.pop %v561
    %v564 = vmul.f32 %v561, %v563
    %v565 = vsub.f32 1.0, %v564
    %v566 = vmul.f32 %v563, %v565
    %v567 = vadd.f32 %v563, %v566
    %vm568 = vweird.f32 %v561
    %vm569 = vweird.f32 %v563
    %vm570 = vmor %vm568, %vm569
    %v571 = vsel %vm570, %v563, %v567
    %v572 = vand.u32 2147483647, %v561
    %vm573 = vcmp.eq.f32.partialorder %v572, 8.507059e+37
    %v574 = vand.u32 %v561, 2147483648
    %v575 = vor.u32 1.1754944e-38, %v574
    %v576 = vsel %vm573, %v575, %v571
    %v577 = vmul.f32 1.0, %v576
    %v578 = vrcp.pop %v562
    %v579 = vmul.f32 %v562, %v578
    %v580 = vsub.f32 1.0, %v579
    %v581 = vmul.f32 %v578, %v580
    %v582 = vadd.f32 %v578, %v581
    %vm583 = vweird.f32 %v562
    %vm584 = vweird.f32 %v578
    %vm585 = vmor %vm583, %vm584
    %v586 = vsel %vm585, %v578, %v582
    %v587 = vand.u32 2147483647, %v562
    %vm588 = vcmp.eq.f32.partialorder %v587, 8.507059e+37
    %v589 = vand.u32 %v562, 2147483648
    %v590 = vor.u32 1.1754944e-38, %v589
    %v591 = vsel %vm588, %v590, %v586
    %v592 = vmul.f32 1.0, %v591
    %v593 = vtanh.pop %v554
    %v595 = vrot.slane %v492, 7
    %v597 = vmul.f32 %v577, %v595
    %599 = vrot.lane.b32.xlu0 %v593, 64
    %v600 = vpop.permute.xlu0 %599
    %v602 = vmul.f32 %v577, %v600
    %604 = vrot.lane.b32.xlu0 %v602, 64
    %v605 = vpop.permute.xlu0 %604
    %v607 = vadd.f32 %v597, %v605
    %v608 = vtanh.pop %v607
    %610 = vrot.lane.b32.xlu0 %v608, 64
    %v611 = vpop.permute.xlu0 %610
    %v613 = vmul.f32 %v592, %v611
    %vm614 = vcmask 257027
    %615 = vst.msk [vmem:[#allocation7] sm:$0x8] %vm614, %v613
    %vm616 = vcmask 519427
    %617 = vst.msk [vmem:[#allocation7 + $0x1] sm:$0x8] %vm616, %v613
    %v619 = vrot.slane %v613, 3
    %v620 = vsel %vm164, %v619, 0
    %622 = vmatpush.msra.mxu0 0.0
    %623 = vmatpush.msra.mxu0 0.0
    %624 = vmatpush.msra.mxu0 0.0
    %625 = vmatpush.msra.mxu0 0.0
    %626 = vmatpush.msra.mxu0 0.0
    %627 = vmatpush.msra.mxu0 0.0
    %628 = vmatpush.msra.mxu0 0.0
    %629 = vmatpush.msra.mxu0 0.0
    %630 = vmatpush.msra.mxu0 %v160
    %631 = vmatpush.msra.mxu0 %v158
    %632 = vmatpush.msra.mxu0 %v156
    %633 = vmatpush.msra.mxu0 %v154
    %634 = vmatpush.msra.mxu0 %v152
    %635 = vmatpush.msra.mxu0 %v150
    %636 = vmatpush.msra.mxu0 %v148
    %637 = vmatpush.msra.mxu0 %v146
    %638 = vmatmul.f32.gmra.mxu0 %v620
    %v639 = vpop.f32.mrf.mxu0
    %v640 = vadd.f32 0.0, %v639
    %641 = vdwg.mxu0
    %642 = vmatpush.msra.mxu0 0.0
    %643 = vmatpush.msra.mxu0 0.0
    %644 = vmatpush.msra.mxu0 0.0
    %645 = vmatpush.msra.mxu0 0.0
    %646 = vmatpush.msra.mxu0 0.0
    %647 = vmatpush.msra.mxu0 0.0
    %648 = vmatpush.msra.mxu0 0.0
    %649 = vmatpush.msra.mxu0 0.0
    %650 = vmatpush.msra.mxu0 %v161
    %651 = vmatpush.msra.mxu0 %v159
    %652 = vmatpush.msra.mxu0 %v157
    %653 = vmatpush.msra.mxu0 %v155
    %654 = vmatpush.msra.mxu0 %v153
    %655 = vmatpush.msra.mxu0 %v151
    %656 = vmatpush.msra.mxu0 %v149
    %657 = vmatpush.msra.mxu0 %v147
    %658 = vmatmul.f32.gmra.mxu0 %v620
    %v659 = vpop.f32.mrf.mxu0
    %v660 = vadd.f32 0.0, %v659
    %661 = vdwg.mxu0
    %v664 = vrot.slane %v640, 4
    %v665 = vrot.slane %v660, 4
    %v668 = vadd.f32 %v124, %v664
    %v669 = vadd.f32 %v144, %v665
    %v670 = vxor.u32 %v668, 2147483648
    %v671 = vxor.u32 %v669, 2147483648
    %v672 = vmul.f32 %v670, 1.442695
    %v673 = vpow.pop %v672
    %v674 = vmul.f32 %v671, 1.442695
    %v675 = vpow.pop %v674
    %v676 = vadd.f32 %v673, 1.0
    %v677 = vadd.f32 %v675, 1.0
    %v678 = vrcp.pop %v676
    %v679 = vmul.f32 %v676, %v678
    %v680 = vsub.f32 1.0, %v679
    %v681 = vmul.f32 %v678, %v680
    %v682 = vadd.f32 %v678, %v681
    %vm683 = vweird.f32 %v676
    %vm684 = vweird.f32 %v678
    %vm685 = vmor %vm683, %vm684
    %v686 = vsel %vm685, %v678, %v682
    %v687 = vand.u32 2147483647, %v676
    %vm688 = vcmp.eq.f32.partialorder %v687, 8.507059e+37
    %v689 = vand.u32 %v676, 2147483648
    %v690 = vor.u32 1.1754944e-38, %v689
    %v691 = vsel %vm688, %v690, %v686
    %v692 = vmul.f32 1.0, %v691
    %v693 = vrcp.pop %v677
    %v694 = vmul.f32 %v677, %v693
    %v695 = vsub.f32 1.0, %v694
    %v696 = vmul.f32 %v693, %v695
    %v697 = vadd.f32 %v693, %v696
    %vm698 = vweird.f32 %v677
    %vm699 = vweird.f32 %v693
    %vm700 = vmor %vm698, %vm699
    %v701 = vsel %vm700, %v693, %v697
    %v702 = vand.u32 2147483647, %v677
    %vm703 = vcmp.eq.f32.partialorder %v702, 8.507059e+37
    %v704 = vand.u32 %v677, 2147483648
    %v705 = vor.u32 1.1754944e-38, %v704
    %v706 = vsel %vm703, %v705, %v701
    %v707 = vmul.f32 1.0, %v706
    %v708 = vtanh.pop %v669
    %v710 = vrot.slane %v607, 7
    %v712 = vmul.f32 %v692, %v710
    %714 = vrot.lane.b32.xlu0 %v708, 64
    %v715 = vpop.permute.xlu0 %714
    %v717 = vmul.f32 %v692, %v715
    %719 = vrot.lane.b32.xlu0 %v717, 64
    %v720 = vpop.permute.xlu0 %719
    %v722 = vadd.f32 %v712, %v720
    %v723 = vtanh.pop %v722
    %725 = vrot.lane.b32.xlu0 %v723, 64
    %v726 = vpop.permute.xlu0 %725
    %v728 = vmul.f32 %v707, %v726
    %vm729 = vcmask 258052
    %730 = vst.msk [vmem:[#allocation7] sm:$0x10] %vm729, %v728
    %vm731 = vcmask 520452
    %732 = vst.msk [vmem:[#allocation7 - $0x1] sm:$0x10] %vm731, %v728
    %v734 = vrot.slane %v728, 4
    %v735 = vsel %vm164, %v734, 0
    %737 = vmatpush.msra.mxu0 0.0
    %738 = vmatpush.msra.mxu0 0.0
    %739 = vmatpush.msra.mxu0 0.0
    %740 = vmatpush.msra.mxu0 0.0
    %741 = vmatpush.msra.mxu0 0.0
    %742 = vmatpush.msra.mxu0 0.0
    %743 = vmatpush.msra.mxu0 0.0
    %744 = vmatpush.msra.mxu0 0.0
    %745 = vmatpush.msra.mxu0 %v160
    %746 = vmatpush.msra.mxu0 %v158
    %747 = vmatpush.msra.mxu0 %v156
    %748 = vmatpush.msra.mxu0 %v154
    %749 = vmatpush.msra.mxu0 %v152
    %750 = vmatpush.msra.mxu0 %v150
    %751 = vmatpush.msra.mxu0 %v148
    %752 = vmatpush.msra.mxu0 %v146
    %753 = vmatmul.f32.gmra.mxu0 %v735
    %v754 = vpop.f32.mrf.mxu0
    %v755 = vadd.f32 0.0, %v754
    %756 = vdwg.mxu0
    %757 = vmatpush.msra.mxu0 0.0
    %758 = vmatpush.msra.mxu0 0.0
    %759 = vmatpush.msra.mxu0 0.0
    %760 = vmatpush.msra.mxu0 0.0
    %761 = vmatpush.msra.mxu0 0.0
    %762 = vmatpush.msra.mxu0 0.0
    %763 = vmatpush.msra.mxu0 0.0
    %764 = vmatpush.msra.mxu0 0.0
    %765 = vmatpush.msra.mxu0 %v161
    %766 = vmatpush.msra.mxu0 %v159
    %767 = vmatpush.msra.mxu0 %v157
    %768 = vmatpush.msra.mxu0 %v155
    %769 = vmatpush.msra.mxu0 %v153
    %770 = vmatpush.msra.mxu0 %v151
    %771 = vmatpush.msra.mxu0 %v149
    %772 = vmatpush.msra.mxu0 %v147
    %773 = vmatmul.f32.gmra.mxu0 %v735
    %v774 = vpop.f32.mrf.mxu0
    %v775 = vadd.f32 0.0, %v774
    %776 = vdwg.mxu0
    %v779 = vrot.slane %v755, 3
    %v780 = vrot.slane %v775, 3
    %v783 = vadd.f32 %v124, %v779
    %v784 = vadd.f32 %v144, %v780
    %v785 = vxor.u32 %v783, 2147483648
    %v786 = vxor.u32 %v784, 2147483648
    %v787 = vmul.f32 %v785, 1.442695
    %v788 = vpow.pop %v787
    %v789 = vmul.f32 %v786, 1.442695
    %v790 = vpow.pop %v789
    %v791 = vadd.f32 %v788, 1.0
    %v792 = vadd.f32 %v790, 1.0
    %v793 = vrcp.pop %v791
    %v794 = vmul.f32 %v791, %v793
    %v795 = vsub.f32 1.0, %v794
    %v796 = vmul.f32 %v793, %v795
    %v797 = vadd.f32 %v793, %v796
    %vm798 = vweird.f32 %v791
    %vm799 = vweird.f32 %v793
    %vm800 = vmor %vm798, %vm799
    %v801 = vsel %vm800, %v793, %v797
    %v802 = vand.u32 2147483647, %v791
    %vm803 = vcmp.eq.f32.partialorder %v802, 8.507059e+37
    %v804 = vand.u32 %v791, 2147483648
    %v805 = vor.u32 1.1754944e-38, %v804
    %v806 = vsel %vm803, %v805, %v801
    %v807 = vmul.f32 1.0, %v806
    %v808 = vrcp.pop %v792
    %v809 = vmul.f32 %v792, %v808
    %v810 = vsub.f32 1.0, %v809
    %v811 = vmul.f32 %v808, %v810
    %v812 = vadd.f32 %v808, %v811
    %vm813 = vweird.f32 %v792
    %vm814 = vweird.f32 %v808
    %vm815 = vmor %vm813, %vm814
    %v816 = vsel %vm815, %v808, %v812
    %v817 = vand.u32 2147483647, %v792
    %vm818 = vcmp.eq.f32.partialorder %v817, 8.507059e+37
    %v819 = vand.u32 %v792, 2147483648
    %v820 = vor.u32 1.1754944e-38, %v819
    %v821 = vsel %vm818, %v820, %v816
    %v822 = vmul.f32 1.0, %v821
    %v823 = vtanh.pop %v784
    %v825 = vrot.slane %v722, 7
    %v827 = vmul.f32 %v807, %v825
    %829 = vrot.lane.b32.xlu0 %v823, 64
    %v830 = vpop.permute.xlu0 %829
    %v832 = vmul.f32 %v807, %v830
    %834 = vrot.lane.b32.xlu0 %v832, 64
    %v835 = vpop.permute.xlu0 %834
    %v837 = vadd.f32 %v827, %v835
    %v838 = vtanh.pop %v837
    %840 = vrot.lane.b32.xlu0 %v838, 64
    %v841 = vpop.permute.xlu0 %840
    %v843 = vmul.f32 %v822, %v841
    %vm844 = vcmask 259077
    %845 = vst.msk [vmem:[#allocation7] sm:$0x20] %vm844, %v843
    %vm846 = vcmask 521477
    %847 = vst.msk [vmem:[#allocation7 - $0x3] sm:$0x20] %vm846, %v843
    %v849 = vrot.slane %v843, 5
    %v850 = vsel %vm164, %v849, 0
    %852 = vmatpush.msra.mxu0 0.0
    %853 = vmatpush.msra.mxu0 0.0
    %854 = vmatpush.msra.mxu0 0.0
    %855 = vmatpush.msra.mxu0 0.0
    %856 = vmatpush.msra.mxu0 0.0
    %857 = vmatpush.msra.mxu0 0.0
    %858 = vmatpush.msra.mxu0 0.0
    %859 = vmatpush.msra.mxu0 0.0
    %860 = vmatpush.msra.mxu0 %v160
    %861 = vmatpush.msra.mxu0 %v158
    %862 = vmatpush.msra.mxu0 %v156
    %863 = vmatpush.msra.mxu0 %v154
    %864 = vmatpush.msra.mxu0 %v152
    %865 = vmatpush.msra.mxu0 %v150
    %866 = vmatpush.msra.mxu0 %v148
    %867 = vmatpush.msra.mxu0 %v146
    %868 = vmatmul.f32.gmra.mxu0 %v850
    %v869 = vpop.f32.mrf.mxu0
    %v870 = vadd.f32 0.0, %v869
    %871 = vdwg.mxu0
    %872 = vmatpush.msra.mxu0 0.0
    %873 = vmatpush.msra.mxu0 0.0
    %874 = vmatpush.msra.mxu0 0.0
    %875 = vmatpush.msra.mxu0 0.0
    %876 = vmatpush.msra.mxu0 0.0
    %877 = vmatpush.msra.mxu0 0.0
    %878 = vmatpush.msra.mxu0 0.0
    %879 = vmatpush.msra.mxu0 0.0
    %880 = vmatpush.msra.mxu0 %v161
    %881 = vmatpush.msra.mxu0 %v159
    %882 = vmatpush.msra.mxu0 %v157
    %883 = vmatpush.msra.mxu0 %v155
    %884 = vmatpush.msra.mxu0 %v153
    %885 = vmatpush.msra.mxu0 %v151
    %886 = vmatpush.msra.mxu0 %v149
    %887 = vmatpush.msra.mxu0 %v147
    %888 = vmatmul.f32.gmra.mxu0 %v850
    %v889 = vpop.f32.mrf.mxu0
    %v890 = vadd.f32 0.0, %v889
    %891 = vdwg.mxu0
    %v894 = vrot.slane %v870, 2
    %v895 = vrot.slane %v890, 2
    %v898 = vadd.f32 %v124, %v894
    %v899 = vadd.f32 %v144, %v895
    %v900 = vxor.u32 %v898, 2147483648
    %v901 = vxor.u32 %v899, 2147483648
    %v902 = vmul.f32 %v900, 1.442695
    %v903 = vpow.pop %v902
    %v904 = vmul.f32 %v901, 1.442695
    %v905 = vpow.pop %v904
    %v906 = vadd.f32 %v903, 1.0
    %v907 = vadd.f32 %v905, 1.0
    %v908 = vrcp.pop %v906
    %v909 = vmul.f32 %v906, %v908
    %v910 = vsub.f32 1.0, %v909
    %v911 = vmul.f32 %v908, %v910
    %v912 = vadd.f32 %v908, %v911
    %vm913 = vweird.f32 %v906
    %vm914 = vweird.f32 %v908
    %vm915 = vmor %vm913, %vm914
    %v916 = vsel %vm915, %v908, %v912
    %v917 = vand.u32 2147483647, %v906
    %vm918 = vcmp.eq.f32.partialorder %v917, 8.507059e+37
    %v919 = vand.u32 %v906, 2147483648
    %v920 = vor.u32 1.1754944e-38, %v919
    %v921 = vsel %vm918, %v920, %v916
    %v922 = vmul.f32 1.0, %v921
    %v923 = vrcp.pop %v907
    %v924 = vmul.f32 %v907, %v923
    %v925 = vsub.f32 1.0, %v924
    %v926 = vmul.f32 %v923, %v925
    %v927 = vadd.f32 %v923, %v926
    %vm928 = vweird.f32 %v907
    %vm929 = vweird.f32 %v923
    %vm930 = vmor %vm928, %vm929
    %v931 = vsel %vm930, %v923, %v927
    %v932 = vand.u32 2147483647, %v907
    %vm933 = vcmp.eq.f32.partialorder %v932, 8.507059e+37
    %v934 = vand.u32 %v907, 2147483648
    %v935 = vor.u32 1.1754944e-38, %v934
    %v936 = vsel %vm933, %v935, %v931
    %v937 = vmul.f32 1.0, %v936
    %v938 = vtanh.pop %v899
    %v940 = vrot.slane %v837, 7
    %v942 = vmul.f32 %v922, %v940
    %944 = vrot.lane.b32.xlu0 %v938, 64
    %v945 = vpop.permute.xlu0 %944
    %v947 = vmul.f32 %v922, %v945
    %949 = vrot.lane.b32.xlu0 %v947, 64
    %v950 = vpop.permute.xlu0 %949
    %v952 = vadd.f32 %v942, %v950
    %v953 = vtanh.pop %v952
    %955 = vrot.lane.b32.xlu0 %v953, 64
    %v956 = vpop.permute.xlu0 %955
    %v958 = vmul.f32 %v937, %v956
    %vm959 = vcmask 260102
    %960 = vst.msk [vmem:[#allocation7] sm:$0x40] %vm959, %v958
    %vm961 = vcmask 522502
    %962 = vst.msk [vmem:[#allocation7 - $0x5] sm:$0x40] %vm961, %v958
    %v964 = vrot.slane %v958, 6
    %v965 = vsel %vm164, %v964, 0
    %967 = vmatpush.msra.mxu0 0.0
    %968 = vmatpush.msra.mxu0 0.0
    %969 = vmatpush.msra.mxu0 0.0
    %970 = vmatpush.msra.mxu0 0.0
    %971 = vmatpush.msra.mxu0 0.0
    %972 = vmatpush.msra.mxu0 0.0
    %973 = vmatpush.msra.mxu0 0.0
    %974 = vmatpush.msra.mxu0 0.0
    %975 = vmatpush.msra.mxu0 %v160
    %976 = vmatpush.msra.mxu0 %v158
    %977 = vmatpush.msra.mxu0 %v156
    %978 = vmatpush.msra.mxu0 %v154
    %979 = vmatpush.msra.mxu0 %v152
    %980 = vmatpush.msra.mxu0 %v150
    %981 = vmatpush.msra.mxu0 %v148
    %982 = vmatpush.msra.mxu0 %v146
    %983 = vmatmul.f32.gmra.mxu0 %v965
    %v984 = vpop.f32.mrf.mxu0
    %v985 = vadd.f32 0.0, %v984
    %986 = vdwg.mxu0
    %987 = vmatpush.msra.mxu0 0.0
    %988 = vmatpush.msra.mxu0 0.0
    %989 = vmatpush.msra.mxu0 0.0
    %990 = vmatpush.msra.mxu0 0.0
    %991 = vmatpush.msra.mxu0 0.0
    %992 = vmatpush.msra.mxu0 0.0
    %993 = vmatpush.msra.mxu0 0.0
    %994 = vmatpush.msra.mxu0 0.0
    %995 = vmatpush.msra.mxu0 %v161
    %996 = vmatpush.msra.mxu0 %v159
    %997 = vmatpush.msra.mxu0 %v157
    %998 = vmatpush.msra.mxu0 %v155
    %999 = vmatpush.msra.mxu0 %v153
    %1000 = vmatpush.msra.mxu0 %v151
    %1001 = vmatpush.msra.mxu0 %v149
    %1002 = vmatpush.msra.mxu0 %v147
    %1003 = vmatmul.f32.gmra.mxu0 %v965
    %v1004 = vpop.f32.mrf.mxu0
    %v1005 = vadd.f32 0.0, %v1004
    %1006 = vdwg.mxu0
    %v1009 = vrot.slane %v985, 1
    %v1010 = vrot.slane %v1005, 1
    %v1013 = vadd.f32 %v124, %v1009
    %v1014 = vadd.f32 %v144, %v1010
    %v1015 = vxor.u32 %v1013, 2147483648
    %v1016 = vxor.u32 %v1014, 2147483648
    %v1017 = vmul.f32 %v1015, 1.442695
    %v1018 = vpow.pop %v1017
    %v1019 = vmul.f32 %v1016, 1.442695
    %v1020 = vpow.pop %v1019
    %v1021 = vadd.f32 %v1018, 1.0
    %v1022 = vadd.f32 %v1020, 1.0
    %v1023 = vrcp.pop %v1021
    %v1024 = vmul.f32 %v1021, %v1023
    %v1025 = vsub.f32 1.0, %v1024
    %v1026 = vmul.f32 %v1023, %v1025
    %v1027 = vadd.f32 %v1023, %v1026
    %vm1028 = vweird.f32 %v1021
    %vm1029 = vweird.f32 %v1023
    %vm1030 = vmor %vm1028, %vm1029
    %v1031 = vsel %vm1030, %v1023, %v1027
    %v1032 = vand.u32 2147483647, %v1021
    %vm1033 = vcmp.eq.f32.partialorder %v1032, 8.507059e+37
    %v1034 = vand.u32 %v1021, 2147483648
    %v1035 = vor.u32 1.1754944e-38, %v1034
    %v1036 = vsel %vm1033, %v1035, %v1031
    %v1037 = vmul.f32 1.0, %v1036
    %v1038 = vrcp.pop %v1022
    %v1039 = vmul.f32 %v1022, %v1038
    %v1040 = vsub.f32 1.0, %v1039
    %v1041 = vmul.f32 %v1038, %v1040
    %v1042 = vadd.f32 %v1038, %v1041
    %vm1043 = vweird.f32 %v1022
    %vm1044 = vweird.f32 %v1038
    %vm1045 = vmor %vm1043, %vm1044
    %v1046 = vsel %vm1045, %v1038, %v1042
    %v1047 = vand.u32 2147483647, %v1022
    %vm1048 = vcmp.eq.f32.partialorder %v1047, 8.507059e+37
    %v1049 = vand.u32 %v1022, 2147483648
    %v1050 = vor.u32 1.1754944e-38, %v1049
    %v1051 = vsel %vm1048, %v1050, %v1046
    %v1052 = vmul.f32 1.0, %v1051
    %v1053 = vtanh.pop %v1014
    %v1055 = vrot.slane %v952, 7
    %v1057 = vmul.f32 %v1037, %v1055
    %1059 = vrot.lane.b32.xlu0 %v1053, 64
    %v1060 = vpop.permute.xlu0 %1059
    %v1062 = vmul.f32 %v1037, %v1060
    %1064 = vrot.lane.b32.xlu0 %v1062, 64
    %v1065 = vpop.permute.xlu0 %1064
    %v1067 = vadd.f32 %v1057, %v1065
    %v1068 = vtanh.pop %v1067
    %1070 = vrot.lane.b32.xlu0 %v1068, 64
    %v1071 = vpop.permute.xlu0 %1070
    %v1073 = vmul.f32 %v1052, %v1071
    %vm1074 = vcmask 261127
    %1075 = vst.msk [vmem:[#allocation7] sm:$0x80] %vm1074, %v1073
    %vm1076 = vcmask 523527
    %1077 = vst.msk [vmem:[#allocation7 - $0x7] sm:$0x80] %vm1076, %v1073
    // Predicated region
    $region30: #{tpu_custom_call.1} parent=1 // pred_check
      _
    $region31: #{tpu_custom_call.1} parent=1 // pred_check_branch
      %1079 = sbr.rel (0) target = $region33
    $region32: #{tpu_custom_call.1} parent=1 // pred_region
      %1081 = vsyncadd [#allocation4], 0
      %s1083 = sshll.u32 [#allocation7], 4
      %s1084 = int_to_ptr.vmem [resolvable:$true] %s1083
      %s1085 = sshll.u32 %s5, 4
      %s1086 = int_to_ptr.hbm [resolvable:$true] %s1085
      %1088 = dma.vmem_to_hbm [thread:$0]  %s1084, 128, %s1086, [#allocation4]
    $region33: #{tpu_custom_call.1} parent=1 // pred_fallthru
      _
    // Predicated region
    $region34: #{tpu_custom_call.1} parent=1 // pred_check
      _
    $region35: #{tpu_custom_call.1} parent=1 // pred_check_branch
      %1090 = sbr.rel (0) target = $region37
    $region36: #{tpu_custom_call.1} parent=1 // pred_region
      %1092 = dma.done [#allocation4], 128
    $region37: #{tpu_custom_call.1} parent=1 // pred_fallthru
      _
    %1093 = vsyncpa [#allocation3], 1
    %1094 = vsyncpa [#allocation6], 1
    %1095 = vsyncpa [#allocation4], 1

</llo_original>
